<compile_context>
chip_gen: v5e
topology: v5e:2x2
jax: 0.10.0
libtpu: 0.0.40
codegen_flags: <defaults>
</compile_context>

<pallas_src>
import functools
import math

import jax
import jax.numpy as jnp
from jax.experimental import pallas as pl
from jax.experimental.pallas import tpu as pltpu


def make_positional_encoding(d_model: int, max_len: int = 5000,
                             dtype=jnp.float32) -> jnp.ndarray:
    """Build the positional-encoding buffer ONCE (module init): (max_len, d_model)."""
    position = jnp.arange(max_len, dtype=jnp.float32)[:, None]                 # (max_len, 1)
    div_term = jnp.exp(
        jnp.arange(0, d_model, 2, dtype=jnp.float32) * (-math.log(10000.0) / d_model)
    )                                                                          # (d_model//2,)
    angles = position * div_term                                               # (max_len, d//2)
    pe = jnp.zeros((max_len, d_model), dtype=jnp.float32)
    pe = pe.at[:, 0::2].set(jnp.sin(angles))
    pe = pe.at[:, 1::2].set(jnp.cos(angles))
    return pe.astype(dtype)


def _pe_add_kernel(x_ref, pe_ref, o_ref, *, repeats: int):
    # pe_ref: (tile_s, D).  Lane-tile / batch-broadcast happen in-register: the
    # kernel is HBM-bound, so VPU/XLU work here is free filler.
    pe = pe_ref[...]
    if repeats > 1:
        pe = jnp.concatenate([pe] * repeats, axis=-1)      # (tile_s, B*D)
    if x_ref.ndim == 3:
        pe = pe[:, None, :]                                # broadcast over batch
    o_ref[...] = x_ref[...] + pe


def _choose_tile_s(S: int, row_bytes: int, sub: int, *,
                   target_bytes: int = 6 << 20,
                   min_tile_bytes: int = 1 << 20,
                   min_grid: int = 4) -> int:
    """Pick tile_s (multiple of `sub`) giving ~target_bytes x-tiles.

    Only shrink to reach >= min_grid steps (pipelining / v7x megacore) when the
    tiles stay >= min_tile_bytes -- single-TC chips gain nothing from extra steps.
    """
    row_bytes = max(1, row_bytes)
    padded_s = -(-S // sub) * sub
    tile_s = (target_bytes // row_bytes) // sub * sub
    tile_s = max(sub, min(tile_s, padded_s))
    if pl.cdiv(S, tile_s) < min_grid:
        per = -(-S // min_grid)
        cand = max(sub, -(-per // sub) * sub)
        if cand * row_bytes >= min_tile_bytes and cand < tile_s:
            tile_s = cand
    return int(tile_s)


def positional_encoding_forward(x: jnp.ndarray, pe: jnp.ndarray, *,
                                tile_s: int | None = None,
                                donate_x: bool = False) -> jnp.ndarray:
    """x: (seq_len, batch, d_model).  pe: (max_len, d_model) in x.dtype (preferred,
    from make_positional_encoding) or raw (max_len, 1, d_model) fp32 (fallback).
    Returns x + pe[:seq_len] broadcast over batch."""
    S, B, D = x.shape

    # Fallback path only -- callers should pass the precomputed 2-D buffer so no
    # convert/reshape of the full (max_len, D) buffer happens per call.
    if pe.ndim == 3:
        pe = pe.reshape(pe.shape[0], pe.shape[-1])
    if pe.dtype != x.dtype:
        pe = pe.astype(x.dtype)

    max_len = pe.shape[0]
    assert max_len >= S, "sequence longer than positional-encoding buffer"
    assert pe.shape[1] == D, "d_model mismatch between x and pe"

    itemsize = jnp.dtype(x.dtype).itemsize
    sub = max(8, 32 // itemsize)          # native sublane pack: 8 f32, 16 bf16, 32 int8

    # Lane folding: if D is lane-sparse (<128) or B is sublane-sparse, flatten
    # (S, B, D) -> (S, B*D) (free, row-major) so stores are lane-dense and the
    # sublane axis is the dense sequence axis.  pe is lane-tiled in-kernel.
    fold = (D < 128) or (B < sub)
    if fold:
        x_k = x.reshape(S, B * D)
        repeats = B
        blk_x = lambda ts: (ts, B * D)
        map_x = lambda i: (i, 0)
    else:
        x_k = x
        repeats = 1
        blk_x = lambda ts: (ts, B, D)
        map_x = lambda i: (i, 0, 0)

    row_bytes = B * D * itemsize
    if tile_s is None:
        tile_s = _choose_tile_s(S, row_bytes, sub)
    else:
        tile_s = max(sub, (tile_s // sub) * sub)
        tile_s = min(tile_s, -(-S // sub) * sub)

    grid = (pl.cdiv(S, tile_s),)

    # VMEM budget: 2-deep buffering of (x in + out + pe) tiles, plus headroom.
    x_tile_bytes = tile_s * row_bytes
    pe_tile_bytes = tile_s * D * itemsize
    required = 2 * (2 * x_tile_bytes + pe_tile_bytes)
    vmem_limit = int(min(48 << 20, max(required + (4 << 20), 16 << 20)))

    kernel = functools.partial(_pe_add_kernel, repeats=repeats)

    out = pl.pallas_call(
        kernel,
        out_shape=jax.ShapeDtypeStruct(x_k.shape, x.dtype),
        grid_spec=pltpu.PrefetchScalarGridSpec(
            num_scalar_prefetch=0,
            grid=grid,
            in_specs=[
                pl.BlockSpec(blk_x(tile_s), map_x),
                # Full pe buffer is passed (no per-call pe[:S] slice copy in HBM);
                # only blocks with start < S are touched, and Pallas clamps the
                # ragged last block to the array extent (no OOB DMA).
                pl.BlockSpec((tile_s, D), lambda i: (i, 0)),
            ],
            out_specs=pl.BlockSpec(blk_x(tile_s), map_x),
        ),
        compiler_params=pltpu.CompilerParams(
            dimension_semantics=("parallel",),
            vmem_limit_bytes=vmem_limit,
        ),
        input_output_aliases=({0: 0} if donate_x else {}),
    )(x_k, pe)

    return out.reshape(S, B, D) if fold else out


if __name__ == "__main__":
    # Small shapes consistent with the module: x is (seq_len, batch, d_model).
    seq_len, batch, d_model = 8, 2, 32
    max_len = 64  # synthetic buffer (>= seq_len)

    key = jax.random.PRNGKey(0)
    x = jax.random.normal(key, (seq_len, batch, d_model), dtype=jnp.float32)

    # "Module init": pe built/cast once, outside the forward hot path.
    pe2d = make_positional_encoding(d_model, max_len, dtype=x.dtype)

    out = positional_encoding_forward(x, pe2d)          # exercises the lane-fold path
    out = jax.block_until_ready(out)

    ref = x + pe2d[:seq_len][:, None, :]
    assert out.shape == x.shape
    assert jnp.allclose(out, ref, atol=1e-6), "mismatch vs reference (fold path)"

    # Also exercise the lane-dense 3-D path (d_model multiple of 128, batch >= 8).
    s2, b2, d2 = 16, 8, 128
    x2 = jax.random.normal(jax.random.PRNGKey(1), (s2, b2, d2), dtype=jnp.float32)
    pe2 = make_positional_encoding(d2, 32, dtype=x2.dtype)
    out2 = jax.block_until_ready(positional_encoding_forward(x2, pe2))
    ref2 = x2 + pe2[:s2][:, None, :]
    assert jnp.allclose(out2, ref2, atol=1e-6), "mismatch vs reference (3-D path)"

    print("KERNEL_OK")
</pallas_src>

<mosaic_0001>
module attributes {stable_mosaic.version = 11 : i64} {
  func.func @_pe_add_kernel(%arg0: i32, %arg1: memref<8x64xf32, #tpu.memory_space<vmem>>, %arg2: memref<8x32xf32, #tpu.memory_space<vmem>>, %arg3: memref<8x64xf32, #tpu.memory_space<vmem>>) attributes {dimension_semantics = [#tpu.dimension_semantics<parallel>], iteration_bounds = array<i64: 1>, scalar_prefetch = 0 : i64, scratch_operands = 0 : i64, tpu.core_type = #tpu.core_type<tc>, window_params = [{transform_indices = @transform_0, window_bounds = array<i64: 8, 64>}, {transform_indices = @transform_1, window_bounds = array<i64: 8, 32>}, {transform_indices = @transform_2, window_bounds = array<i64: 8, 64>}]} {
    %c0 = arith.constant 0 : index
    %c0_0 = arith.constant 0 : index
    %0 = vector.load %arg2[%c0, %c0_0] : memref<8x32xf32, #tpu.memory_space<vmem>>, vector<8x32xf32>
    %1 = tpu.concatenate %0, %0 in 1 : vector<8x32xf32>, vector<8x32xf32> -> vector<8x64xf32>
    %c0_1 = arith.constant 0 : index
    %c0_2 = arith.constant 0 : index
    %2 = vector.load %arg1[%c0_1, %c0_2] : memref<8x64xf32, #tpu.memory_space<vmem>>, vector<8x64xf32>
    %3 = arith.addf %2, %1 : vector<8x64xf32>
    %c0_3 = arith.constant 0 : index
    %c0_4 = arith.constant 0 : index
    %4 = vector.load %arg3[%c0_3, %c0_4] : memref<8x64xf32, #tpu.memory_space<vmem>>, vector<8x64xf32>
    tpu.vector_store %arg3[%c0_3, %c0_4], %3 {strides = array<i32>} : memref<8x64xf32, #tpu.memory_space<vmem>>, vector<8x64xf32>,
    return
  }
  func.func @transform_0(%arg0: i32) -> (i32, i32) {
    %c0_i32 = arith.constant 0 : i32
    %c0_i32_0 = arith.constant 0 : i32
    return %arg0, %c0_i32 : i32, i32
  }
  func.func @transform_1(%arg0: i32) -> (i32, i32) {
    %c0_i32 = arith.constant 0 : i32
    %c0_i32_0 = arith.constant 0 : i32
    return %arg0, %c0_i32 : i32, i32
  }
  func.func @transform_2(%arg0: i32) -> (i32, i32) {
    %c0_i32 = arith.constant 0 : i32
    %c0_i32_0 = arith.constant 0 : i32
    return %arg0, %c0_i32 : i32, i32
  }
}

</mosaic_0001>

<llo_original>
// kernel: tpu_custom_call.1
$region0: #{tpu_custom_call.1}
  #allocation0 [shape = 'u32[]', space=smem, size = 0x4, offset = 0x4, fixed_abs, tag = 'smem constant byte address 0x4 - core index']
  #allocation1 [shape = 'u32[72,128]{1,0:T(1,128)}', space=vmem, size = 0x9000, scoped, tag = 'internal scratch']
  %s0 = inlined_call_operand.vmem [shape: f32[8,64], index: 0, kind: input, shape index: {}]
  %s1 = inlined_call_operand.vmem [shape: f32[64,32], index: 1, kind: input, shape index: {}]
  %s2 = inlined_call_operand.hbm [shape: f32[8,64], index: 2, kind: output, shape index: {}]
  %s3 = sld [smem:[#allocation0]]
  $region18: #{tpu_custom_call.1} parent=0
    _
  %s5 = ssub.s32 1, %s3
  %s6 = scalar_select 0, %s5, %s3
  $region1: #{tpu_custom_call.1} parent=0
    #allocation2 [shape = 'u8[4096]{0}', space=vmem, size = 0x1000, scoped, tag = 'output window, operand 0, single buffered']
    #allocation3 [shape = 's32[1]{0}', space=sflag, size = 0x4, scoped, tag = 'scoped memory for tpu_custom_call.1']
    %7 = vsyncpa [#allocation3], 0
    // Predicated region
    $region2: #{tpu_custom_call.1} parent=1 // pred_check
      _
    $region3: #{tpu_custom_call.1} parent=1 // pred_check_branch
      %9 = sbr.rel (0) target = $region5
    $region4: #{tpu_custom_call.1} parent=1 // pred_region
      _
    $region5: #{tpu_custom_call.1} parent=1 // pred_fallthru
      _
    // Predicated region
    $region6: #{tpu_custom_call.1} parent=1 // pred_check
      _
    $region7: #{tpu_custom_call.1} parent=1 // pred_check_branch
      %11 = sbr.rel (0) target = $region9
    $region8: #{tpu_custom_call.1} parent=1 // pred_region
      _
    $region9: #{tpu_custom_call.1} parent=1 // pred_fallthru
      _
    %v12 = vld [vmem:[%s1] sm:$0xff]
    %14 = vrot.lane.b32.xlu0 %v12, 32
    %v15 = vpop.permute.xlu0 %14
    %vm17 = vcmask 261120
    %v18 = vsel %vm17, %v12, %v15
    %v19 = vld [vmem:[%s0] sm:$0xff]
    %v20 = vadd.f32 %v19, %v18
    %vm21 = vcmask 523264
    %22 = vst.msk [vmem:[#allocation2] sm:$0xff] %vm21, %v20
    // Predicated region
    $region10: #{tpu_custom_call.1} parent=1 // pred_check
      _
    $region11: #{tpu_custom_call.1} parent=1 // pred_check_branch
      %24 = sbr.rel (0) target = $region13
    $region12: #{tpu_custom_call.1} parent=1 // pred_region
      %26 = vsyncadd [#allocation3], 0
      %s28 = sshll.u32 [#allocation2], 4
      %s29 = int_to_ptr.vmem [resolvable:$true] %s28
      %s30 = sshll.u32 %s2, 4
      %s31 = int_to_ptr.hbm [resolvable:$true] %s30
      %33 = dma.vmem_to_hbm [thread:$0]  %s29, 128, %s31, [#allocation3]
    $region13: #{tpu_custom_call.1} parent=1 // pred_fallthru
      _
    // Predicated region
    $region14: #{tpu_custom_call.1} parent=1 // pred_check
      _
    $region15: #{tpu_custom_call.1} parent=1 // pred_check_branch
      %35 = sbr.rel (0) target = $region17
    $region16: #{tpu_custom_call.1} parent=1 // pred_region
      %37 = dma.done [#allocation3], 128
    $region17: #{tpu_custom_call.1} parent=1 // pred_fallthru
      _
    %38 = vsyncpa [#allocation3], 1

</llo_original>
